<compile_context>
chip_gen: v5e
topology: v5e:2x2
jax: 0.10.0
libtpu: 0.0.40
codegen_flags: <defaults>
</compile_context>

<pallas_src>
import math
import functools

import numpy as np
import jax
import jax.numpy as jnp
from jax.experimental import pallas as pl
from jax.experimental.pallas import tpu as pltpu


# ----------------------------------------------------------------------------
# Pallas kernel 1: pairwise-distance scores for knn top-k (lane-dense).
#   score[b, m, n] = 2 * <x_m, x_n> - ||x_n||^2        (for n < n_valid)
#   score[b, m, n] = -inf                               (padded columns)
# The original formula also subtracts ||x_m||^2, but that term is constant
# along the top-k axis (n), so dropping it leaves the top-k indices unchanged.
# ----------------------------------------------------------------------------
def _pdist_kernel(xt_ref, x_ref, out_ref, *, n_valid):
    xt = xt_ref[0]                                     # (Np, C) f32, pre-transposed LHS
    x = x_ref[0]                                       # (C, Np) f32
    g = jnp.dot(xt, x, preferred_element_type=jnp.float32)   # (Np, Np)
    sq = jnp.sum(x * x, axis=0, keepdims=True)                # (1, Np) -> ||x_n||^2
    score = 2.0 * g - sq
    # mask padded columns so lax.top_k never selects them
    col = jax.lax.broadcasted_iota(jnp.int32, score.shape, 1)
    out_ref[0] = jnp.where(col < n_valid, score, -jnp.inf)


def pairwise_distance(x_nc_pad, x_cn_pad, n_valid):
    B, n_pad, C = x_nc_pad.shape
    kernel = functools.partial(_pdist_kernel, n_valid=n_valid)
    return pl.pallas_call(
        kernel,
        out_shape=jax.ShapeDtypeStruct((B, n_pad, n_pad), jnp.float32),
        grid=(B,),
        in_specs=[pl.BlockSpec((1, n_pad, C), lambda b: (b, 0, 0)),
                  pl.BlockSpec((1, C, n_pad), lambda b: (b, 0, 0))],
        out_specs=pl.BlockSpec((1, n_pad, n_pad), lambda b: (b, 0, 0)),
        compiler_params=pltpu.CompilerParams(dimension_semantics=("parallel",)),
    )(x_nc_pad, x_cn_pad)


# ----------------------------------------------------------------------------
# Pallas kernel 2: GCNeXt main compute (tconvs + sconvs + residual fuse).
# Grid = (B,): one step per batch element, no scratch, no pl.when phases.
# ----------------------------------------------------------------------------
def _gcnext_kernel(xt_ref, xf_ref, x_ref,
                   w1t_ref, b1t_ref, w2t_ref, b2t_ref, w3t_ref, b3t_ref,
                   w1sn_ref, w1sc_ref, b1s_ref, w2s_ref, b2s_ref, w3s_ref, b3s_ref,
                   out_ref,
                   *, n_pad, k_nn):
    x_f32 = x_ref[0]                                   # (C, Np) f32 (residual)
    x_bf = x_f32.astype(jnp.bfloat16)

    # ---------------- temporal branch (tconvs) ----------------
    # conv1 fused over the 3 neighbor slots: (W, C) x (C, 3*Np)
    h1 = jnp.maximum(
        jnp.dot(w1t_ref[...], xt_ref[0], preferred_element_type=jnp.float32)
        + b1t_ref[...], 0.0)                           # (W, 3*Np)
    h1b = h1.astype(jnp.bfloat16)

    # grouped (1,3) conv as three block-diagonal (W,W) matmuls, one per tap.
    w2t = w2t_ref[...]                                 # (3, W, W) bf16 block-diag
    acc = jnp.dot(w2t[0], h1b[:, 0:n_pad], preferred_element_type=jnp.float32)
    acc = acc + jnp.dot(w2t[1], h1b[:, n_pad:2 * n_pad],
                        preferred_element_type=jnp.float32)
    acc = acc + jnp.dot(w2t[2], h1b[:, 2 * n_pad:3 * n_pad],
                        preferred_element_type=jnp.float32)
    h2 = jnp.maximum(acc + b2t_ref[...], 0.0)          # (W, Np)
    tout = jnp.dot(w3t_ref[...], h2.astype(jnp.bfloat16),
                   preferred_element_type=jnp.float32) + b3t_ref[...]   # (c_out, Np)

    # ---------------- spatial/knn branch (sconvs) ----------------
    # center-feature projection (shared by all k neighbor chunks)
    hc = jnp.dot(w1sc_ref[...], x_bf, preferred_element_type=jnp.float32) \
        + b1s_ref[...]                                 # (W, Np)
    # neighbor half: one wide matmul over all k chunks at once
    h1s_n = jnp.dot(w1sn_ref[...], xf_ref[0],
                    preferred_element_type=jnp.float32)           # (W, k*Np)
    hc_rep = jnp.concatenate([hc] * k_nn, axis=1)                 # (W, k*Np) lane concat
    h1s = jnp.maximum(h1s_n + hc_rep, 0.0)
    h2s = jnp.maximum(
        jnp.dot(w2s_ref[...], h1s.astype(jnp.bfloat16),
                preferred_element_type=jnp.float32) + b2s_ref[...], 0.0)
    s = jnp.dot(w3s_ref[...], h2s.astype(jnp.bfloat16),
                preferred_element_type=jnp.float32)               # (c_out, k*Np)

    # max over the k neighbor chunks: pairwise tree max over 128-aligned slices
    chunks = [s[:, c * n_pad:(c + 1) * n_pad] for c in range(k_nn)]
    while len(chunks) > 1:
        nxt = [jnp.maximum(chunks[i], chunks[i + 1])
               for i in range(0, len(chunks) - 1, 2)]
        if len(chunks) % 2:
            nxt.append(chunks[-1])
        chunks = nxt
    smax = chunks[0]                                   # (c_out, Np)

    # ---------------- fuse: relu(tout + identity + sout) ----------------
    # b3s is constant over k, so adding it after the max is exact.
    out_ref[0] = jnp.maximum(tout + x_f32 + smax + b3s_ref[...], 0.0)


# ----------------------------------------------------------------------------
# Host-side helpers: block-diagonal grouped-conv weights.
# ----------------------------------------------------------------------------
def _grouped_block_diag_1x3(w2t, groups):
    # w2t: (width, wg, 3) -> (3, width, width) block-diagonal per tap.
    width, wg, kt = w2t.shape
    bd = jnp.zeros((kt, width, width), w2t.dtype)
    for g in range(groups):
        sl = slice(g * wg, (g + 1) * wg)
        bd = bd.at[:, sl, sl].set(jnp.transpose(w2t[sl, :, :], (2, 0, 1)))
    return bd


def _grouped_block_diag_1x1(w2s, groups):
    # w2s: (width, wg) -> (width, width) block-diagonal.
    width, wg = w2s.shape
    bd = jnp.zeros((width, width), w2s.dtype)
    for g in range(groups):
        sl = slice(g * wg, (g + 1) * wg)
        bd = bd.at[sl, sl].set(w2s[sl, :])
    return bd


def gcnext_pallas(xt_flat, xf_nbr, x_pad, params, *, groups, k_nn, n_pad):
    B, C, _ = x_pad.shape
    width = params["w1t"].shape[0]
    c_out = params["w3t"].shape[0]
    bf = jnp.bfloat16

    w2t_bd = _grouped_block_diag_1x3(params["w2t"], groups)   # (3, W, W)
    w2s_bd = _grouped_block_diag_1x1(params["w2s"], groups)   # (W, W)

    args = (
        xt_flat, xf_nbr, x_pad,
        params["w1t"].astype(bf), params["b1t"].reshape(width, 1),
        w2t_bd.astype(bf),        params["b2t"].reshape(width, 1),
        params["w3t"].astype(bf), params["b3t"].reshape(c_out, 1),
        params["w1s"][:, :C].astype(bf),   # neighbor half of conv1 (sconvs)
        params["w1s"][:, C:].astype(bf),   # center half of conv1 (sconvs)
        params["b1s"].reshape(width, 1),
        w2s_bd.astype(bf),        params["b2s"].reshape(width, 1),
        params["w3s"].astype(bf), params["b3s"].reshape(c_out, 1),
    )

    def full_spec(a):
        return pl.BlockSpec(a.shape, lambda b, nd=a.ndim: (0,) * nd)

    in_specs = [
        pl.BlockSpec((1, C, 3 * n_pad), lambda b: (b, 0, 0)),       # temporal graph
        pl.BlockSpec((1, C, k_nn * n_pad), lambda b: (b, 0, 0)),    # knn neighbor chunks
        pl.BlockSpec((1, C, n_pad), lambda b: (b, 0, 0)),           # x (center / residual)
    ] + [full_spec(a) for a in args[3:]]

    kernel = functools.partial(_gcnext_kernel, n_pad=n_pad, k_nn=k_nn)
    return pl.pallas_call(
        kernel,
        out_shape=jax.ShapeDtypeStruct((B, c_out, n_pad), jnp.float32),
        grid=(B,),
        in_specs=in_specs,
        out_specs=pl.BlockSpec((1, c_out, n_pad), lambda b: (b, 0, 0)),
        compiler_params=pltpu.CompilerParams(
            dimension_semantics=("parallel",)),
    )(*args)


# ----------------------------------------------------------------------------
# Glue: temporal-graph neighbor indices (exact port of the Python loops),
# knn top-k, gathers, parameter init.
# ----------------------------------------------------------------------------
def build_temporal_neighbors(seg_lens, max_seg_length=200):
    # TODO(synk): data-dependent Python control flow in the original module
    # (loops over concrete seg_lens values); built host-side with numpy.
    seg_lens = np.asarray(seg_lens)
    B, max_seg_num = seg_lens.shape
    L4 = max_seg_length // 4
    N = max_seg_num * L4
    out = np.zeros((B, N, 3), dtype=np.int32)
    for i in range(B):
        rows = []
        last_valid = 0
        skip_seg = 0
        base_idx = i * max_seg_num * max_seg_length // 4
        for j in range(max_seg_num):
            for kk in range(L4):
                idx = j * L4 + kk
                n_valid = math.ceil(seg_lens[i][j] / 4.0)
                if kk < n_valid:
                    rows.append([base_idx + last_valid, base_idx + idx, base_idx + idx])
                    last_valid = idx
                    if kk == 0 and j != 0:
                        rows[skip_seg][2] = base_idx + idx
                    if kk == n_valid - 1:
                        skip_seg = idx
                    else:
                        rows[idx][2] = base_idx + idx + 1
                else:
                    rows.append([base_idx + idx, base_idx + idx, base_idx + idx])
        out[i] = np.array(rows, dtype=np.int32)
    return out


def init_params(key, channel_in, channel_out, groups=32, width_group=4):
    width = width_group * groups
    wg = width // groups
    ks = jax.random.split(key, 12)

    def w(k, shape, fan_in):
        return (jax.random.normal(k, shape, jnp.float32) / np.sqrt(fan_in)).astype(jnp.float32)

    def b(k, n):
        return (0.01 * jax.random.normal(k, (n,), jnp.float32)).astype(jnp.float32)

    return {
        "w1t": w(ks[0], (width, channel_in), channel_in),          "b1t": b(ks[1], width),
        "w2t": w(ks[2], (width, wg, 3), wg * 3),                   "b2t": b(ks[3], width),
        "w3t": w(ks[4], (channel_out, width), width),              "b3t": b(ks[5], channel_out),
        "w1s": w(ks[6], (width, channel_in * 2), channel_in * 2),  "b1s": b(ks[7], width),
        "w2s": w(ks[8], (width, wg), wg),                          "b2s": b(ks[9], width),
        "w3s": w(ks[10], (channel_out, width), width),             "b3s": b(ks[11], channel_out),
    }


def gcnext_forward(x, seg_lens_np, params, *, k=10, groups=32, max_seg_length=200):
    B, C, N = x.shape
    n_pad = ((N + 127) // 128) * 128      # lane-dense temporal axis
    pad = n_pad - N
    bf = jnp.bfloat16

    # ---- temporal graph: gather 3 neighbors per position -> (C, 3*Np) slab
    nbr = jnp.asarray(build_temporal_neighbors(seg_lens_np, max_seg_length))  # (B, N, 3)
    xt_bnc = jnp.transpose(x, (0, 2, 1))                                      # (B, N, C)
    tg = xt_bnc.reshape(B * N, C)[nbr]                                        # (B, N, 3, C)
    xt_cjn = jnp.transpose(tg, (0, 3, 2, 1))                                  # (B, C, 3, N) single transpose
    xt_flat = jnp.pad(xt_cjn, ((0, 0), (0, 0), (0, 0), (0, pad))) \
        .reshape(B, C, 3 * n_pad).astype(bf)

    # ---- knn graph (style=1): lane-dense pdist kernel; padded columns are
    # masked to -inf in-kernel so top_k never picks them.  f32 for exact parity.
    x_pad = jnp.pad(x, ((0, 0), (0, 0), (0, pad)))                            # (B, C, Np) f32
    xt_pad = jnp.pad(xt_bnc, ((0, 0), (0, pad), (0, 0)))                      # (B, Np, C) f32
    pd = pairwise_distance(xt_pad, x_pad, N)                                  # (B, Np, Np)
    _, idx = jax.lax.top_k(pd, k)                                             # (B, Np, k)
    idx = idx[:, :N, :]                                                       # (B, N, k)

    # only the gathered-neighbor half is materialized; the center half
    # (x repeated k times) is recomputed inside the kernel.
    nbr_feat = xt_bnc[jnp.arange(B)[:, None, None], idx]                      # (B, N, k, C)
    xf_ckn = jnp.transpose(nbr_feat, (0, 3, 2, 1))                            # (B, C, k, N) single transpose
    xf_nbr = jnp.pad(xf_ckn, ((0, 0), (0, 0), (0, 0), (0, pad))) \
        .reshape(B, C, k * n_pad).astype(bf)
    # TODO(synk): move the knn gather into the kernel (PrefetchScalarGridSpec with
    # idx as scalar prefetch + per-tile DMA gathers) to avoid the XLA relayout.

    out_pad = gcnext_pallas(xt_flat, xf_nbr, x_pad, params,
                            groups=groups, k_nn=k, n_pad=n_pad)
    return out_pad[:, :, :N], idx


# ----------------------------------------------------------------------------
# Pure-JAX reference (same gathered graphs).  Operands feeding matmuls are
# rounded to bf16 to mirror the kernel's bf16-MXU / f32-accumulate arithmetic.
# ----------------------------------------------------------------------------
def reference_forward(x, xt_r, xf, params, groups):
    bq = lambda a: a.astype(jnp.bfloat16).astype(jnp.float32)
    B, C, N = x.shape
    W = params["w1t"].shape[0]
    wg = W // groups
    K = xf.shape[-1]

    x_t = jnp.transpose(xt_r, (0, 2, 3, 1))  # (B, C, N, 3)
    h1 = jax.nn.relu(jnp.einsum("wc,bcnj->bwnj", bq(params["w1t"]), bq(x_t))
                     + params["b1t"][None, :, None, None])
    w2 = params["w2t"].reshape(groups, wg, wg, 3)
    h1g = bq(h1).reshape(B, groups, wg, N, 3)
    h2 = jax.nn.relu(jnp.einsum("goij,bginj->bgon", bq(w2), h1g).reshape(B, W, N)
                     + params["b2t"][None, :, None])
    tout = jnp.einsum("ow,bwn->bon", bq(params["w3t"]), bq(h2)) + params["b3t"][None, :, None]

    h1s = jax.nn.relu(jnp.einsum("wc,bcnk->bwnk", bq(params["w1s"]), bq(xf))
                      + params["b1s"][None, :, None, None])
    w2s = params["w2s"].reshape(groups, wg, wg)
    h1sg = bq(h1s).reshape(B, groups, wg, N, K)
    h2s = jax.nn.relu(jnp.einsum("goi,bgink->bgonk", bq(w2s), h1sg).reshape(B, W, N, K)
                      + params["b2s"][None, :, None, None])
    s = jnp.einsum("ow,bwnk->bonk", bq(params["w3s"]), bq(h2s)) \
        + params["b3s"][None, :, None, None]
    sout = jnp.max(s, axis=-1)
    return jax.nn.relu(tout + x + sout)


if __name__ == "__main__":
    B = 2
    channel_in = channel_out = 8
    groups = 4
    width_group = 4
    k = 10
    max_seg_length = 200                       # GCNeXt.forward uses the default
    max_seg_num = 2
    N = max_seg_num * (max_seg_length // 4)    # 100 temporal positions

    key = jax.random.PRNGKey(0)
    kx, kp = jax.random.split(key)
    x = jax.random.normal(kx, (B, channel_in, N), jnp.float32)
    seg_lens = np.array([[200, 120], [64, 0]], dtype=np.int32)
    params = init_params(kp, channel_in, channel_out, groups, width_group)

    out, idx = gcnext_forward(x, seg_lens, params, k=k, groups=groups,
                              max_seg_length=max_seg_length)
    out = jax.block_until_ready(out)

    # correctness check against a plain-JAX reference built from the same graphs
    nbr = jnp.asarray(build_temporal_neighbors(seg_lens, max_seg_length))
    xt_bnc = jnp.transpose(x, (0, 2, 1))
    tg = xt_bnc.reshape(B * N, channel_in)[nbr]
    xt_r = jnp.transpose(tg, (0, 2, 3, 1))
    nbr_feat = xt_bnc[jnp.arange(B)[:, None, None], idx]
    center = jnp.broadcast_to(xt_bnc[:, :, None, :], (B, N, k, channel_in))
    xf = jnp.transpose(jnp.concatenate([nbr_feat, center], axis=3), (0, 3, 1, 2))
    ref = reference_forward(x, xt_r, xf, params, groups)
    # bf16 matmul operands (mirrored in the reference) -> modest tolerance.
    np.testing.assert_allclose(np.asarray(out), np.asarray(ref), rtol=1e-2, atol=1e-2)

    print("KERNEL_OK")
</pallas_src>

<mosaic_0001>
module attributes {stable_mosaic.version = 11 : i64} {
  func.func @_pdist_kernel(%arg0: i32, %arg1: memref<1x128x8xf32, #tpu.memory_space<vmem>>, %arg2: memref<1x8x128xf32, #tpu.memory_space<vmem>>, %arg3: memref<1x128x128xf32, #tpu.memory_space<vmem>>) attributes {dimension_semantics = [#tpu.dimension_semantics<parallel>], iteration_bounds = array<i64: 2>, scalar_prefetch = 0 : i64, scratch_operands = 0 : i64, tpu.core_type = #tpu.core_type<tc>, window_params = [{transform_indices = @transform_0, window_bounds = array<i64: 1, 128, 8>}, {transform_indices = @transform_1, window_bounds = array<i64: 1, 8, 128>}, {transform_indices = @transform_2, window_bounds = array<i64: 1, 128, 128>}]} {
    %c0 = arith.constant 0 : index
    %c0_0 = arith.constant 0 : index
    %c0_1 = arith.constant 0 : index
    %0 = vector.load %arg1[%c0, %c0_0, %c0_1] : memref<1x128x8xf32, #tpu.memory_space<vmem>>, vector<1x128x8xf32>
    %1 = vector.shape_cast %0 : vector<1x128x8xf32> to vector<128x8xf32>
    %c0_2 = arith.constant 0 : index
    %c0_3 = arith.constant 0 : index
    %c0_4 = arith.constant 0 : index
    %2 = vector.load %arg2[%c0_2, %c0_3, %c0_4] : memref<1x8x128xf32, #tpu.memory_space<vmem>>, vector<1x8x128xf32>
    %3 = vector.shape_cast %2 : vector<1x8x128xf32> to vector<8x128xf32>
    %cst = arith.constant dense<0.000000e+00> : vector<128x128xf32>
    %4 = tpu.matmul %1, %3, %cst {dimension_numbers = #tpu.dot_dimension_numbers<[1], [0], [0], [1], [0, 0, 1, 1], [], []>} : vector<128x8xf32>, vector<8x128xf32>, vector<128x128xf32> -> vector<128x128xf32>
    %5 = arith.mulf %3, %3 : vector<8x128xf32>
    %cst_5 = arith.constant dense<0.000000e+00> : vector<128xf32>
    %6 = vector.multi_reduction <add>, %5, %cst_5 [0] : vector<8x128xf32> to vector<128xf32>
    %7 = vector.shape_cast %6 : vector<128xf32> to vector<1x128xf32>
    %cst_6 = arith.constant 2.000000e+00 : f32
    %8 = vector.broadcast %cst_6 : f32 to vector<128x128xf32>
    %9 = arith.mulf %8, %4 : vector<128x128xf32>
    %10 = vector.broadcast %7 : vector<1x128xf32> to vector<128x128xf32>
    %11 = arith.subf %9, %10 : vector<128x128xf32>
    %12 = tpu.iota {dimensions = array<i32: 1>} : vector<128x128xi32>
    %c100_i32 = arith.constant 100 : i32
    %13 = vector.broadcast %c100_i32 : i32 to vector<128x128xi32>
    %14 = arith.cmpi slt, %12, %13 : vector<128x128xi32>
    %cst_7 = arith.constant 0xFF800000 : f32
    %15 = vector.broadcast %cst_7 : f32 to vector<128x128xf32>
    %16 = arith.select %14, %11, %15 : vector<128x128xi1>, vector<128x128xf32>
    %c0_8 = arith.constant 0 : index
    %c0_9 = arith.constant 0 : index
    %c0_10 = arith.constant 0 : index
    %17 = vector.load %arg3[%c0_8, %c0_9, %c0_10] : memref<1x128x128xf32, #tpu.memory_space<vmem>>, vector<1x128x128xf32>
    %18 = vector.shape_cast %17 : vector<1x128x128xf32> to vector<128x128xf32>
    %19 = vector.shape_cast %16 : vector<128x128xf32> to vector<1x128x128xf32>
    tpu.vector_store %arg3[%c0_8, %c0_9, %c0_10], %19 {strides = array<i32>} : memref<1x128x128xf32, #tpu.memory_space<vmem>>, vector<1x128x128xf32>,
    return
  }
  func.func @transform_0(%arg0: i32) -> (i32, i32, i32) {
    %c0_i32 = arith.constant 0 : i32
    %c0_i32_0 = arith.constant 0 : i32
    %c0_i32_1 = arith.constant 0 : i32
    return %arg0, %c0_i32, %c0_i32_0 : i32, i32, i32
  }
  func.func @transform_1(%arg0: i32) -> (i32, i32, i32) {
    %c0_i32 = arith.constant 0 : i32
    %c0_i32_0 = arith.constant 0 : i32
    %c0_i32_1 = arith.constant 0 : i32
    return %arg0, %c0_i32, %c0_i32_0 : i32, i32, i32
  }
  func.func @transform_2(%arg0: i32) -> (i32, i32, i32) {
    %c0_i32 = arith.constant 0 : i32
    %c0_i32_0 = arith.constant 0 : i32
    %c0_i32_1 = arith.constant 0 : i32
    return %arg0, %c0_i32, %c0_i32_0 : i32, i32, i32
  }
}

</mosaic_0001>

<llo_original>
// kernel: tpu_custom_call.1
$region0: #{tpu_custom_call.1}
  #allocation0 [shape = 'u32[]', space=smem, size = 0x4, offset = 0x4, fixed_abs, tag = 'smem constant byte address 0x4 - core index']
  #allocation1 [shape = 'u32[72,128]{1,0:T(1,128)}', space=vmem, size = 0x9000, scoped, tag = 'internal scratch']
  %s0 = inlined_call_operand.vmem [shape: f32[2,128,8], index: 0, kind: input, shape index: {}]
  %s1 = inlined_call_operand.vmem [shape: f32[2,8,128], index: 1, kind: input, shape index: {}]
  %s2 = inlined_call_operand.hbm [shape: f32[2,128,128], index: 2, kind: output, shape index: {}]
  %s3 = sld [smem:[#allocation0]]
  $region41: #{tpu_custom_call.1} parent=0
    _
  %s5 = ssub.s32 1, %s3
  %s6 = scalar_select 0, %s5, %s3
  $region1: #{tpu_custom_call.1} parent=0
    #allocation2 [shape = 'u8[131072]{0}', space=vmem, size = 0x20000, scoped, tag = 'output window, operand 0']
    #allocation3 [shape = 's32[2]{0}', space=sflag, size = 0x8, scoped, tag = 'scoped memory for tpu_custom_call.1']
    %7 = vsyncpa [#allocation3], 0
    %s8 = scalar_lea.sflag [#allocation3], 1
    %9 = vsyncpa %s8, 0
    loop: start=0, step=1, limit=4
    $region2: #{tpu_custom_call.1} parent=1 // loop_pre_header
      _
    $region3: #{tpu_custom_call.1} parent=1 // loop_header
      %s11 = sphi 0, %s15
      %p12 = scmp.ge.s32.totalorder %s11, 4
      %s21 = sphi 0, %s23
      %s24 = sphi 0, %s21
      %s25 = sphi 0, %s24
      %s41 = sphi 0, %s25
      %s47 = sphi 0, %s49
      %s50 = sphi 0, %s47
      %s51 = sphi 0, %s50
      %s67 = sphi 0, %s51
      %s73 = sphi 0, %s75
      %s76 = sphi 0, %s73
      %s77 = sphi 0, %s76
      %s93 = sphi 0, %s77
    $region4: #{tpu_custom_call.1} parent=1 // loop_header_branch
      %14 = sbr.rel (%p12) target = $region8
    $region5: #{tpu_custom_call.1} parent=1 // loop_body
      %s16 = ssub.s32 %s11, 1
      %s17 = ssub.s32 %s11, 2
      %s18 = sadd.s32 %s11, 1
      %s19 = ssub.s32 %s11, %s18
      %p20 = scmp.eq.s32.totalorder %s19, 0
      %s22 = sadd.s32 %s21, 1
      %s23 = scalar_select %p20, %s21, %s22
      %p26 = pneg %p20
      %p27 = scmp.eq.s32.totalorder %s11, 1
      %p28 = por %p26, %p27
      %p29 = scmp.ne.s32.totalorder %s21, %s24
      %p30 = scmp.eq.s32.totalorder %s11, 0
      %p31 = por %p29, %p30
      %p32 = scmp.ne.s32.totalorder %s21, %s24
      %p33 = scmp.eq.s32.totalorder %s16, 1
      %p34 = por %p32, %p33
      %p35 = scmp.ne.s32.totalorder %s24, %s25
      %p36 = scmp.eq.s32.totalorder %s16, 0
      %p37 = por %p35, %p36
      %p38 = scmp.ne.s32.totalorder %s24, %s25
      %p39 = scmp.eq.s32.totalorder %s17, 1
      %p40 = por %p38, %p39
      %p42 = scmp.ne.s32.totalorder %s25, %s41
      %p43 = scmp.eq.s32.totalorder %s17, 0
      %p44 = por %p42, %p43
      %s45 = ssub.s32 %s11, %s18
      %p46 = scmp.eq.s32.totalorder %s45, 0
      %s48 = sadd.s32 %s47, 1
      %s49 = scalar_select %p46, %s47, %s48
      %p52 = pneg %p46
      %p53 = scmp.eq.s32.totalorder %s11, 1
      %p54 = por %p52, %p53
      %p55 = scmp.ne.s32.totalorder %s47, %s50
      %p56 = scmp.eq.s32.totalorder %s11, 0
      %p57 = por %p55, %p56
      %p58 = scmp.ne.s32.totalorder %s47, %s50
      %p59 = scmp.eq.s32.totalorder %s16, 1
      %p60 = por %p58, %p59
      %p61 = scmp.ne.s32.totalorder %s50, %s51
      %p62 = scmp.eq.s32.totalorder %s16, 0
      %p63 = por %p61, %p62
      %p64 = scmp.ne.s32.totalorder %s50, %s51
      %p65 = scmp.eq.s32.totalorder %s17, 1
      %p66 = por %p64, %p65
      %p68 = scmp.ne.s32.totalorder %s51, %s67
      %p69 = scmp.eq.s32.totalorder %s17, 0
      %p70 = por %p68, %p69
      %s71 = ssub.s32 %s11, %s18
      %p72 = scmp.eq.s32.totalorder %s71, 0
      %s74 = sadd.s32 %s73, 1
      %s75 = scalar_select %p72, %s73, %s74
      %p78 = pneg %p72
      %p79 = scmp.eq.s32.totalorder %s11, 1
      %p80 = por %p78, %p79
      %p81 = scmp.ne.s32.totalorder %s73, %s76
      %p82 = scmp.eq.s32.totalorder %s11, 0
      %p83 = por %p81, %p82
      %p84 = scmp.ne.s32.totalorder %s73, %s76
      %p85 = scmp.eq.s32.totalorder %s16, 1
      %p86 = por %p84, %p85
      %p87 = scmp.ne.s32.totalorder %s76, %s77
      %p88 = scmp.eq.s32.totalorder %s16, 0
      %p89 = por %p87, %p88
      %p90 = scmp.ne.s32.totalorder %s76, %s77
      %p91 = scmp.eq.s32.totalorder %s17, 1
      %p92 = por %p90, %p91
      %p94 = scmp.ne.s32.totalorder %s77, %s93
      %p95 = scmp.eq.s32.totalorder %s17, 0
      %p96 = por %p94, %p95
      %p97 = scmp.le.s32.totalorder 1, %s11
      %p98 = scmp.lt.s32.totalorder %s11, 3
      %p99 = pnand %p97, %p98
      %p100 = pneg %p99
      // Predicated region
      $region9: #{tpu_custom_call.1} parent=5 // pred_check
        _
      $region10: #{tpu_custom_call.1} parent=5 // pred_check_branch
        %102 = sbr.rel (%p99) target = $region12
      $region11: #{tpu_custom_call.1} parent=5 // pred_region
        %s103 = ssub.s32 %s11, 1
      $region12: #{tpu_custom_call.1} parent=5 // pred_fallthru
        _
      %p104 = scmp.lt.s32.totalorder %s11, 2
      // Predicated region
      $region13: #{tpu_custom_call.1} parent=5 // pred_check
        %p105 = pneg %p104
      $region14: #{tpu_custom_call.1} parent=5 // pred_check_branch
        %107 = sbr.rel (%p105) target = $region16
      $region15: #{tpu_custom_call.1} parent=5 // pred_region
        // Predicated region
        $region17: #{tpu_custom_call.1} parent=15 // pred_check
          %p108 = pneg %p31
        $region18: #{tpu_custom_call.1} parent=15 // pred_check_branch
          %110 = sbr.rel (%p108) target = $region20
        $region19: #{tpu_custom_call.1} parent=15 // pred_region
          %p111 = scmp.lt.s32.totalorder %s11, 1
          %s112 = scalar_select %p111, %s11, 1
          %s113 = smul.addr %s112, 16
          %s114 = smul.addr %s113, 8
          %s115 = scalar_lea.vmem %s0, %s114
        $region20: #{tpu_custom_call.1} parent=15 // pred_fallthru
          _
        // Predicated region
        $region21: #{tpu_custom_call.1} parent=15 // pred_check
          %p116 = pneg %p57
        $region22: #{tpu_custom_call.1} parent=15 // pred_check_branch
          %118 = sbr.rel (%p116) target = $region24
        $region23: #{tpu_custom_call.1} parent=15 // pred_region
          %p119 = scmp.lt.s32.totalorder %s11, 1
          %s120 = scalar_select %p119, %s11, 1
          %s121 = smul.addr %s120, 8
          %s122 = scalar_lea.vmem %s1, %s121
        $region24: #{tpu_custom_call.1} parent=15 // pred_fallthru
          _
      $region16: #{tpu_custom_call.1} parent=5 // pred_fallthru
        _
      %p123 = scmp.le.s32.totalorder 1, %s11
      %p124 = scmp.lt.s32.totalorder %s11, 3
      %p125 = pnand %p123, %p124
      %p126 = pneg %p125
      // Predicated region
      $region25: #{tpu_custom_call.1} parent=5 // pred_check
        _
      $region26: #{tpu_custom_call.1} parent=5 // pred_check_branch
        %128 = sbr.rel (%p125) target = $region28
      $region27: #{tpu_custom_call.1} parent=5 // pred_region
        %s129 = ssub.s32 %s11, 1
        %p130 = scmp.lt.s32.totalorder %s16, 1
        %s131 = scalar_select %p130, %s16, 1
        %s132 = smul.addr %s131, 16
        %s133 = smul.addr %s132, 8
        %s134 = scalar_lea.vmem %s0, %s133
        %p135 = pneg %p37
        %p136 = pneg %p34
        %p137 = scmp.lt.s32.totalorder %s16, 1
        %s138 = scalar_select %p137, %s16, 1
        %s139 = smul.addr %s138, 8
        %s140 = scalar_lea.vmem %s1, %s139
        %p141 = pneg %p63
        %p142 = pneg %p60
        %p143 = pneg %p89
        %p144 = pneg %p86
        %s145 = sand.u32 %s76, 1
        %s146 = scalar_lea.sflag [#allocation3], %s145
        %s147 = sand.u32 %s76, 1
        %s148 = smul.addr %s147, 128
        %s149 = scalar_lea.vmem [#allocation2], %s148
        %p150 = scmp.lt.s32.totalorder %s16, 1
        %s151 = scalar_select %p150, %s16, 1
        %s152 = smul.addr %s151, 16
        %s153 = smul.addr %s152, 8
        %s154 = scalar_lea.vmem %s0, %s153
        %p155 = scmp.lt.s32.totalorder %s16, 1
        %s156 = scalar_select %p155, %s16, 1
        %s157 = smul.addr %s156, 8
        %s158 = scalar_lea.vmem %s1, %s157
        %v159 = vld [vmem:[%s154] sm:$0xff]
        %v160 = vld [vmem:[%s154 + $0x8] sm:$0xff]
        %v161 = vld [vmem:[%s154 + $0x10] sm:$0xff]
        %v162 = vld [vmem:[%s154 + $0x18] sm:$0xff]
        %v163 = vld [vmem:[%s154 + $0x20] sm:$0xff]
        %v164 = vld [vmem:[%s154 + $0x28] sm:$0xff]
        %v165 = vld [vmem:[%s154 + $0x30] sm:$0xff]
        %v166 = vld [vmem:[%s154 + $0x38] sm:$0xff]
        %v167 = vld [vmem:[%s154 + $0x40] sm:$0xff]
        %v168 = vld [vmem:[%s154 + $0x48] sm:$0xff]
        %v169 = vld [vmem:[%s154 + $0x50] sm:$0xff]
        %v170 = vld [vmem:[%s154 + $0x58] sm:$0xff]
        %v171 = vld [vmem:[%s154 + $0x60] sm:$0xff]
        %v172 = vld [vmem:[%s154 + $0x68] sm:$0xff]
        %v173 = vld [vmem:[%s154 + $0x70] sm:$0xff]
        %v174 = vld [vmem:[%s154 + $0x78] sm:$0xff]
        %v175 = vld [vmem:[%s158] sm:$0xff]
        %vm176 = vcmask 64512
        %v178 = vsel %vm176, %v159, 0
        %v181 = vsel %vm176, %v160, 0
        %v184 = vsel %vm176, %v161, 0
        %v187 = vsel %vm176, %v162, 0
        %v190 = vsel %vm176, %v163, 0
        %v193 = vsel %vm176, %v164, 0
        %v196 = vsel %vm176, %v165, 0
        %v199 = vsel %vm176, %v166, 0
        %v202 = vsel %vm176, %v167, 0
        %v205 = vsel %vm176, %v168, 0
        %v208 = vsel %vm176, %v169, 0
        %v211 = vsel %vm176, %v170, 0
        %v214 = vsel %vm176, %v171, 0
        %v217 = vsel %vm176, %v172, 0
        %v220 = vsel %vm176, %v173, 0
        %v223 = vsel %vm176, %v174, 0
        %225 = vmatpush.msra.mxu0 0.0
        %226 = vmatpush.msra.mxu0 0.0
        %227 = vmatpush.msra.mxu0 0.0
        %228 = vmatpush.msra.mxu0 0.0
        %229 = vmatpush.msra.mxu0 0.0
        %230 = vmatpush.msra.mxu0 0.0
        %231 = vmatpush.msra.mxu0 0.0
        %232 = vmatpush.msra.mxu0 0.0
        %233 = vmatpush.msra.mxu0 0.0
        %234 = vmatpush.msra.mxu0 0.0
        %235 = vmatpush.msra.mxu0 0.0
        %236 = vmatpush.msra.mxu0 0.0
        %237 = vmatpush.msra.mxu0 0.0
        %238 = vmatpush.msra.mxu0 0.0
        %239 = vmatpush.msra.mxu0 0.0
        %240 = vmatpush.msra.mxu0 %v175
        %241 = vmatmul.f32.gmra.mxu0 %v178
        %v242 = vpop.f32.mrf.mxu0
        %v243 = vadd.f32 0.0, %v242
        %244 = vmatmul.f32.gmra.mxu0 %v181
        %v245 = vpop.f32.mrf.mxu0
        %v246 = vadd.f32 0.0, %v245
        %247 = vmatmul.f32.gmra.mxu0 %v184
        %v248 = vpop.f32.mrf.mxu0
        %v249 = vadd.f32 0.0, %v248
        %250 = vmatmul.f32.gmra.mxu0 %v187
        %v251 = vpop.f32.mrf.mxu0
        %v252 = vadd.f32 0.0, %v251
        %253 = vmatmul.f32.gmra.mxu0 %v190
        %v254 = vpop.f32.mrf.mxu0
        %v255 = vadd.f32 0.0, %v254
        %256 = vmatmul.f32.gmra.mxu0 %v193
        %v257 = vpop.f32.mrf.mxu0
        %v258 = vadd.f32 0.0, %v257
        %259 = vmatmul.f32.gmra.mxu0 %v196
        %v260 = vpop.f32.mrf.mxu0
        %v261 = vadd.f32 0.0, %v260
        %262 = vmatmul.f32.gmra.mxu0 %v199
        %v263 = vpop.f32.mrf.mxu0
        %v264 = vadd.f32 0.0, %v263
        %265 = vmatmul.f32.gmra.mxu0 %v202
        %v266 = vpop.f32.mrf.mxu0
        %v267 = vadd.f32 0.0, %v266
        %268 = vmatmul.f32.gmra.mxu0 %v205
        %v269 = vpop.f32.mrf.mxu0
        %v270 = vadd.f32 0.0, %v269
        %271 = vmatmul.f32.gmra.mxu0 %v208
        %v272 = vpop.f32.mrf.mxu0
        %v273 = vadd.f32 0.0, %v272
        %274 = vmatmul.f32.gmra.mxu0 %v211
        %v275 = vpop.f32.mrf.mxu0
        %v276 = vadd.f32 0.0, %v275
        %277 = vmatmul.f32.gmra.mxu0 %v214
        %v278 = vpop.f32.mrf.mxu0
        %v279 = vadd.f32 0.0, %v278
        %280 = vmatmul.f32.gmra.mxu0 %v217
        %v281 = vpop.f32.mrf.mxu0
        %v282 = vadd.f32 0.0, %v281
        %283 = vmatmul.f32.gmra.mxu0 %v220
        %v284 = vpop.f32.mrf.mxu0
        %v285 = vadd.f32 0.0, %v284
        %286 = vmatmul.f32.gmra.mxu0 %v223
        %v287 = vpop.f32.mrf.mxu0
        %v288 = vadd.f32 0.0, %v287
        %289 = vdwg.mxu0
        %v290 = vmul.f32 %v175, %v175
        %v291 = vrot.slane %v290, 4
        %v292 = vadd.f32 %v290, %v291
        %v293 = vrot.slane %v292, 2
        %v294 = vadd.f32 %v292, %v293
        %v295 = vrot.slane %v294, 1
        %v296 = vadd.f32 %v294, %v295
        %v297 = vmul.f32 %v243, 2.0
        %v298 = vmul.f32 %v246, 2.0
        %v299 = vmul.f32 %v249, 2.0
        %v300 = vmul.f32 %v252, 2.0
        %v301 = vmul.f32 %v255, 2.0
        %v302 = vmul.f32 %v258, 2.0
        %v303 = vmul.f32 %v261, 2.0
        %v304 = vmul.f32 %v264, 2.0
        %v305 = vmul.f32 %v267, 2.0
        %v306 = vmul.f32 %v270, 2.0
        %v307 = vmul.f32 %v273, 2.0
        %v308 = vmul.f32 %v276, 2.0
        %v309 = vmul.f32 %v279, 2.0
        %v310 = vmul.f32 %v282, 2.0
        %v311 = vmul.f32 %v285, 2.0
        %v312 = vmul.f32 %v288, 2.0
        %v313 = vsub.f32 %v297, %v296
        %v314 = vsub.f32 %v298, %v296
        %v315 = vsub.f32 %v299, %v296
        %v316 = vsub.f32 %v300, %v296
        %v317 = vsub.f32 %v301, %v296
        %v318 = vsub.f32 %v302, %v296
        %v319 = vsub.f32 %v303, %v296
        %v320 = vsub.f32 %v304, %v296
        %v321 = vsub.f32 %v305, %v296
        %v322 = vsub.f32 %v306, %v296
        %v323 = vsub.f32 %v307, %v296
        %v324 = vsub.f32 %v308, %v296
        %v325 = vsub.f32 %v309, %v296
        %v326 = vsub.f32 %v310, %v296
        %v327 = vsub.f32 %v311, %v296
        %v328 = vsub.f32 %v312, %v296
        %v329 = vlaneseq
        %v330 = vand.u32 %v329, 127
        %vm331 = vcmp.lt.s32.totalorder %v330, 100
        %v332 = vsel %vm331, %v313, -inf
        %v333 = vsel %vm331, %v314, -inf
        %v334 = vsel %vm331, %v315, -inf
        %v335 = vsel %vm331, %v316, -inf
        %v336 = vsel %vm331, %v317, -inf
        %v337 = vsel %vm331, %v318, -inf
        %v338 = vsel %vm331, %v319, -inf
        %v339 = vsel %vm331, %v320, -inf
        %v340 = vsel %vm331, %v321, -inf
        %v341 = vsel %vm331, %v322, -inf
        %v342 = vsel %vm331, %v323, -inf
        %v343 = vsel %vm331, %v324, -inf
        %v344 = vsel %vm331, %v325, -inf
        %v345 = vsel %vm331, %v326, -inf
        %v346 = vsel %vm331, %v327, -inf
        %v347 = vsel %vm331, %v328, -inf
        %348 = vst [vmem:[%s149] sm:$0xff] %v332
        %349 = vst [vmem:[%s149 + $0x8] sm:$0xff] %v333
        %350 = vst [vmem:[%s149 + $0x10] sm:$0xff] %v334
        %351 = vst [vmem:[%s149 + $0x18] sm:$0xff] %v335
        %352 = vst [vmem:[%s149 + $0x20] sm:$0xff] %v336
        %353 = vst [vmem:[%s149 + $0x28] sm:$0xff] %v337
        %354 = vst [vmem:[%s149 + $0x30] sm:$0xff] %v338
        %355 = vst [vmem:[%s149 + $0x38] sm:$0xff] %v339
        %356 = vst [vmem:[%s149 + $0x40] sm:$0xff] %v340
        %357 = vst [vmem:[%s149 + $0x48] sm:$0xff] %v341
        %358 = vst [vmem:[%s149 + $0x50] sm:$0xff] %v342
        %359 = vst [vmem:[%s149 + $0x58] sm:$0xff] %v343
        %360 = vst [vmem:[%s149 + $0x60] sm:$0xff] %v344
        %361 = vst [vmem:[%s149 + $0x68] sm:$0xff] %v345
        %362 = vst [vmem:[%s149 + $0x70] sm:$0xff] %v346
        %363 = vst [vmem:[%s149 + $0x78] sm:$0xff] %v347
        %s364 = sand.u32 %s76, 1
        %s365 = scalar_lea.sflag [#allocation3], %s364
        %s366 = sand.u32 %s76, 1
        %s367 = smul.addr %s366, 128
        %s368 = scalar_lea.vmem [#allocation2], %s367
        // Predicated region
        $region29: #{tpu_custom_call.1} parent=27 // pred_check
          %p369 = pneg %p86
        $region30: #{tpu_custom_call.1} parent=27 // pred_check_branch
          %371 = sbr.rel (%p369) target = $region32
        $region31: #{tpu_custom_call.1} parent=27 // pred_region
          %373 = vsyncadd %s365, 0
          %s374 = smul.addr %s16, 16
          %s375 = smul.addr %s374, 8
          %s376 = scalar_lea.hbm %s2, %s375
          %s377 = sshll.u32 %s368, 4
          %s378 = int_to_ptr.vmem [resolvable:$true] %s377
          %s379 = sshll.u32 %s376, 4
          %s380 = int_to_ptr.hbm [resolvable:$true] %s379
          %385 = dma.vmem_to_hbm [thread:$0]  %s378, 2048, %s380, %s365, 128, 128, 8
        $region32: #{tpu_custom_call.1} parent=27 // pred_fallthru
          _
      $region28: #{tpu_custom_call.1} parent=5 // pred_fallthru
        _
      %p386 = scmp.le.s32.totalorder 2, %s11
      // Predicated region
      $region33: #{tpu_custom_call.1} parent=5 // pred_check
        %p387 = pneg %p386
      $region34: #{tpu_custom_call.1} parent=5 // pred_check_branch
        %389 = sbr.rel (%p387) target = $region36
      $region35: #{tpu_custom_call.1} parent=5 // pred_region
        %s390 = ssub.s32 %s11, 2
        // Predicated region
        $region37: #{tpu_custom_call.1} parent=35 // pred_check
          %p391 = pneg %p92
        $region38: #{tpu_custom_call.1} parent=35 // pred_check_branch
          %393 = sbr.rel (%p391) target = $region40
        $region39: #{tpu_custom_call.1} parent=35 // pred_region
          %s394 = sand.u32 %s77, 1
          %s395 = scalar_lea.sflag [#allocation3], %s394
          %s396 = sand.u32 %s77, 1
          %s397 = smul.addr %s396, 128
          %s398 = scalar_lea.vmem [#allocation2], %s397
          %400 = dma.done %s395, 2048
        $region40: #{tpu_custom_call.1} parent=35 // pred_fallthru
          _
      $region36: #{tpu_custom_call.1} parent=5 // pred_fallthru
        _
    $region6: #{tpu_custom_call.1} parent=1 // loop_footer
      %s15 = sadd.s32 1, %s11
    $region7: #{tpu_custom_call.1} parent=1 // loop_footer_branch
      %10 = sbr.rel target = $region3
    $region8: #{tpu_custom_call.1} parent=1 // loop_exit
      _
    %401 = vsyncpa [#allocation3], 1
    %s402 = scalar_lea.sflag [#allocation3], 1
    %403 = vsyncpa %s402, 1

</llo_original>
